<compile_context>
chip_gen: v6e
topology: v6e:2x2x1
jax: 0.10.0
libtpu: 0.0.40
codegen_flags: <defaults>
</compile_context>

<pallas_src>
import functools

import jax
import jax.numpy as jnp
from jax.experimental import pallas as pl
from jax.experimental.pallas import tpu as pltpu

_MiB = 1024 * 1024


def _sublane_multiple(dtype):
    """Native sublane tile height: (8,128) f32, (16,128) bf16, (32,128) int8."""
    itemsize = jnp.dtype(dtype).itemsize
    if itemsize >= 4:
        return 8
    if itemsize == 2:
        return 16
    return 32


def _vmem_budget():
    """Per-generation scoped-VMEM limit and single (in+out) block-pair budget."""
    try:
        phys = int(pltpu.get_tpu_info().vmem_capacity_bytes)
    except Exception:  # conservative fallback (v7x per-TensorCore)
        phys = 64 * _MiB
    if phys >= 128 * _MiB:        # v5e / v6e: plenty of physical VMEM
        vmem_limit = 64 * _MiB
    else:                         # v7x: 64 MiB physical -> stay conservative
        vmem_limit = 48 * _MiB
    # Headroom for Mosaic internal scratch, then halve for double buffering:
    # budget for ONE (input tile + output tile) pair.
    pair_budget = (vmem_limit - 8 * _MiB) // 2
    return vmem_limit, pair_budget


def _choose_row_tile(nc, bytes_per_row, sub, pair_budget):
    """Biggest sublane-aligned row tile that fits the budget, while keeping
    >= 2 (prefer 4) grid steps when rows allow (megacore + pipeline overlap)."""
    nc_padded = pl.cdiv(nc, sub) * sub
    tr = pair_budget // max(bytes_per_row, 1)
    tr = max(sub, (tr // sub) * sub)
    tr = min(tr, nc_padded)
    # Never shrink a tile below ~1 MiB of payload (or `sub` rows) just to get
    # more steps — per-step overhead would dominate instead.
    min_rows = pl.cdiv(max(sub, pl.cdiv(_MiB, bytes_per_row)), sub) * sub
    for steps in (4, 2):
        cap = ((nc_padded // steps) // sub) * sub
        if cap >= min_rows:
            tr = min(tr, cap)
            break
    return tr


def _pad_rows_kernel(x_ref, o_ref):
    # x_ref: (TR, L)   o_ref: (TR, L + pad) — whole sequence per block.
    rows, l_in = x_ref.shape
    pad = o_ref.shape[-1] - l_in
    x = x_ref[...]
    # Two direct stores: body copy + replicated tail (no lane-axis concat temp).
    o_ref[:, :l_in] = x
    o_ref[:, l_in:] = jnp.broadcast_to(x[:, l_in - 1:l_in], (rows, pad))


def _pad_cols_kernel(x_ref, o_ref, *, straddle_block, last_local):
    # Column-tiled path for very long L.  x_ref/o_ref: (TR, TL).
    # The input index map clamps the column block to the one holding the last
    # valid input column, so every block kind below has the data it needs.
    j = pl.program_id(1)
    rows, tl = o_ref.shape

    @pl.when(j < straddle_block)
    def _():                                  # pure copy block
        o_ref[...] = x_ref[...]

    @pl.when(j == straddle_block)
    def _():                                  # block holding input column L-1
        o_ref[:, :last_local + 1] = x_ref[:, :last_local + 1]
        if last_local + 1 < tl:               # static; skip if block ends at L
            o_ref[:, last_local + 1:] = jnp.broadcast_to(
                x_ref[:, last_local:last_local + 1],
                (rows, tl - last_local - 1))

    @pl.when(j > straddle_block)
    def _():                                  # pure replicated-tail block
        o_ref[...] = jnp.broadcast_to(
            x_ref[:, last_local:last_local + 1], (rows, tl))


def replication_pad1d(x, padding, *, max_block_cols=None):
    """Matches ReplicationPad1d2.forward: appends padding[-1] copies of the
    last element along the last axis (right side only)."""
    pad_right = int(padding[-1])
    assert pad_right >= 0, "negative (cropping) padding not supported"
    # TODO(synk): the reference module only applies right-side padding
    # (padding[-1]); padding[0] is intentionally ignored to match it.
    N, C, L = x.shape
    if pad_right == 0:
        return x
    L_out = L + pad_right
    NC = N * C
    if NC == 0:
        return jnp.zeros((N, C, L_out), x.dtype)

    itemsize = jnp.dtype(x.dtype).itemsize
    sub = _sublane_multiple(x.dtype)
    vmem_limit, pair_budget = _vmem_budget()
    nc_padded = pl.cdiv(NC, sub) * sub
    bytes_per_row = (L + L_out) * itemsize

    x2d = x.reshape(NC, L)
    cost = pl.CostEstimate(
        flops=0, transcendentals=0,
        bytes_accessed=(NC * L + NC * L_out) * itemsize)

    whole_row_ok = sub * bytes_per_row <= pair_budget
    if max_block_cols is not None:            # test hook: force column tiling
        whole_row_ok = whole_row_ok and L_out <= max_block_cols

    if whole_row_ok or L < 128:
        # ---- Path A: row-tiled; each block holds the whole sequence. ----
        # Block widths equal the full array dims, so the (8,128) rule is met
        # for any L / L_out, and one grid step moves a budget-sized slab.
        TR = _choose_row_tile(NC, bytes_per_row, sub, pair_budget)
        out2d = pl.pallas_call(
            _pad_rows_kernel,
            out_shape=jax.ShapeDtypeStruct((NC, L_out), x.dtype),
            grid=(pl.cdiv(NC, TR),),
            in_specs=[pl.BlockSpec((TR, L), lambda i: (i, 0))],
            out_specs=pl.BlockSpec((TR, L_out), lambda i: (i, 0)),
            compiler_params=pltpu.CompilerParams(
                dimension_semantics=("parallel",),
                vmem_limit_bytes=vmem_limit),
            cost_estimate=cost,
        )(x2d)
    else:
        # ---- Path B: (rows, columns) tiling for very long sequences. ----
        # Lane-dense column blocks (multiple of 128); only the block holding
        # input column L-1 appends the replicated tail.
        TL = (pair_budget // (2 * sub * itemsize)) // 128 * 128
        if max_block_cols is not None:
            TL = min(TL, (max_block_cols // 128) * 128)
        TL = min(TL, (L // 128) * 128)
        TL = max(TL, 128)
        TR = pair_budget // (2 * TL * itemsize)
        TR = max(sub, (TR // sub) * sub)
        TR = min(TR, nc_padded)

        straddle_block = (L - 1) // TL        # column block holding col L-1
        last_local = (L - 1) % TL             # its local lane index (static)

        out2d = pl.pallas_call(
            functools.partial(_pad_cols_kernel,
                              straddle_block=straddle_block,
                              last_local=last_local),
            out_shape=jax.ShapeDtypeStruct((NC, L_out), x.dtype),
            grid=(pl.cdiv(NC, TR), pl.cdiv(L_out, TL)),
            in_specs=[pl.BlockSpec(
                (TR, TL),
                lambda i, j: (i, jnp.minimum(j, straddle_block)))],
            out_specs=pl.BlockSpec((TR, TL), lambda i, j: (i, j)),
            compiler_params=pltpu.CompilerParams(
                dimension_semantics=("parallel", "arbitrary"),
                vmem_limit_bytes=vmem_limit),
            cost_estimate=cost,
        )(x2d)

    return out2d.reshape(N, C, L_out)


if __name__ == "__main__":
    key = jax.random.PRNGKey(0)
    k1, k2 = jax.random.split(key)

    def ref_pad(v, padding):
        return jnp.concatenate(
            [v, jnp.repeat(v[:, :, -1:], padding[-1], axis=-1)], axis=-1)

    # Small shape consistent with the module: (N, C, L) with right-side pad.
    N, C, L = 2, 4, 16
    padding = (3, 3)                 # module only uses padding[-1]
    x = jax.random.normal(k1, (N, C, L), dtype=jnp.float32)
    out = jax.block_until_ready(replication_pad1d(x, padding))
    assert out.shape == (N, C, L + padding[-1]), out.shape
    assert jnp.allclose(out, ref_pad(x, padding)), "row-path mismatch vs reference"

    # Exercise the column-tiled long-sequence path (copy / straddle / tail
    # blocks) at small scale by forcing a 256-wide column block.
    x_long = jax.random.normal(k2, (2, 3, 520), dtype=jnp.float32)
    pad_long = (0, 300)
    out_long = jax.block_until_ready(
        replication_pad1d(x_long, pad_long, max_block_cols=256))
    assert out_long.shape == (2, 3, 520 + pad_long[-1]), out_long.shape
    assert jnp.allclose(out_long, ref_pad(x_long, pad_long)), \
        "column-path mismatch vs reference"

    print("KERNEL_OK")
</pallas_src>

<mosaic_0001>
module attributes {stable_mosaic.version = 11 : i64} {
  func.func @_pad_rows_kernel(%arg0: i32, %arg1: memref<8x16xf32, #tpu.memory_space<vmem>>, %arg2: memref<8x19xf32, #tpu.memory_space<vmem>>) attributes {dimension_semantics = [#tpu.dimension_semantics<parallel>], iteration_bounds = array<i64: 1>, scalar_prefetch = 0 : i64, scratch_operands = 0 : i64, tpu.core_type = #tpu.core_type<tc>, window_params = [{transform_indices = @transform_0, window_bounds = array<i64: 8, 16>}, {transform_indices = @transform_1, window_bounds = array<i64: 8, 19>}]} {
    %c0 = arith.constant 0 : index
    %c0_0 = arith.constant 0 : index
    %0 = vector.load %arg1[%c0, %c0_0] : memref<8x16xf32, #tpu.memory_space<vmem>>, vector<8x16xf32>
    %c0_1 = arith.constant 0 : index
    %c0_2 = arith.constant 0 : index
    %1 = vector.load %arg2[%c0_1, %c0_2] : memref<8x19xf32, #tpu.memory_space<vmem>>, vector<8x16xf32>
    tpu.vector_store %arg2[%c0_1, %c0_2], %0 {strides = array<i32>} : memref<8x19xf32, #tpu.memory_space<vmem>>, vector<8x16xf32>,
    %2 = vector.extract_strided_slice %0 {offsets = [0, 15], sizes = [8, 1], strides = [1, 1]} : vector<8x16xf32> to vector<8x1xf32>
    %3 = vector.shape_cast %2 : vector<8x1xf32> to vector<8x1xf32>
    %4 = vector.broadcast %3 : vector<8x1xf32> to vector<8x3xf32>
    %c0_3 = arith.constant 0 : index
    %c16 = arith.constant 16 : index
    %5 = vector.load %arg2[%c0_3, %c16] : memref<8x19xf32, #tpu.memory_space<vmem>>, vector<8x3xf32>
    tpu.vector_store %arg2[%c0_3, %c16], %4 {strides = array<i32>} : memref<8x19xf32, #tpu.memory_space<vmem>>, vector<8x3xf32>,
    return
  }
  func.func @transform_0(%arg0: i32) -> (i32, i32) {
    %c0_i32 = arith.constant 0 : i32
    %c0_i32_0 = arith.constant 0 : i32
    return %arg0, %c0_i32 : i32, i32
  }
  func.func @transform_1(%arg0: i32) -> (i32, i32) {
    %c0_i32 = arith.constant 0 : i32
    %c0_i32_0 = arith.constant 0 : i32
    return %arg0, %c0_i32 : i32, i32
  }
}

</mosaic_0001>

<llo_original>
// kernel: tpu_custom_call.1
$region0: #{tpu_custom_call.1}
  #allocation0 [shape = 'u32[]', space=smem, size = 0x4, offset = 0x4, fixed_abs, tag = 'smem constant byte address 0x4 - core index']
  #allocation1 [shape = 'u32[144,128]{1,0:T(1,128)}', space=vmem, size = 0x12000, scoped, tag = 'internal scratch']
  %s0 = inlined_call_operand.hbm [shape: f32[8,16], index: 0, kind: input, shape index: {}]
  %s1 = inlined_call_operand.hbm [shape: f32[8,19], index: 1, kind: output, shape index: {}]
  %s2 = sld [smem:[#allocation0]]
  $region18: #{tpu_custom_call.1} parent=0
    _
  %s4 = ssub.s32 1, %s2
  %s5 = scalar_select 0, %s4, %s2
  $region1: #{tpu_custom_call.1} parent=0
    #allocation2 [shape = 'u8[4096]{0}', space=vmem, size = 0x1000, scoped, tag = 'input window, operand 0, single buffered']
    #allocation3 [shape = 's32[1]{0}', space=sflag, size = 0x4, scoped, tag = 'scoped memory for tpu_custom_call.1']
    #allocation4 [shape = 's32[1]{0}', space=sflag, size = 0x4, scoped, tag = 'scoped memory for tpu_custom_call.1']
    #allocation5 [shape = 'u8[4096]{0}', space=vmem, size = 0x1000, scoped, tag = 'output window, operand 0, single buffered']
    %6 = vsyncpa [#allocation3], 0
    %7 = vsyncpa [#allocation4], 0
    // Predicated region
    $region2: #{tpu_custom_call.1} parent=1 // pred_check
      _
    $region3: #{tpu_custom_call.1} parent=1 // pred_check_branch
      %9 = sbr.rel (0) target = $region5
    $region4: #{tpu_custom_call.1} parent=1 // pred_region
      %s11 = ssub.s32 128, 128
      %12 = vsyncadd [#allocation3], %s11
      %s14 = sshll.u32 [#allocation2], 4
      %s15 = int_to_ptr.vmem [resolvable:$true] %s14
      %17 = dma.hbm_to_vmem [thread:$0]  %s0, 128, %s15, [#allocation3]
    $region5: #{tpu_custom_call.1} parent=1 // pred_fallthru
      _
    // Predicated region
    $region6: #{tpu_custom_call.1} parent=1 // pred_check
      _
    $region7: #{tpu_custom_call.1} parent=1 // pred_check_branch
      %19 = sbr.rel (0) target = $region9
    $region8: #{tpu_custom_call.1} parent=1 // pred_region
      %20 = dma.done [#allocation3], 128
    $region9: #{tpu_custom_call.1} parent=1 // pred_fallthru
      _
    %v21 = vld [vmem:[#allocation2] sm:$0xff]
    %vm22 = vcmask 130048
    %23 = vst.msk [vmem:[#allocation5] sm:$0xff] %vm22, %v21
    %25 = vset.pattern.permute.xlu0 15
    %26 = vperm.xlu0 %25, %v21
    %v27 = vpop.permute.xlu0 %26
    %vm29 = vcmask 154752
    %30 = vst.msk [vmem:[#allocation5] sm:$0xff] %vm29, %v27
    // Predicated region
    $region10: #{tpu_custom_call.1} parent=1 // pred_check
      _
    $region11: #{tpu_custom_call.1} parent=1 // pred_check_branch
      %32 = sbr.rel (0) target = $region13
    $region12: #{tpu_custom_call.1} parent=1 // pred_region
      %s34 = ssub.s32 128, 128
      %35 = vsyncadd [#allocation4], %s34
      %s37 = sshll.u32 [#allocation5], 4
      %s38 = int_to_ptr.vmem [resolvable:$true] %s37
      %40 = dma.vmem_to_hbm [thread:$0]  %s38, 128, %s1, [#allocation4]
    $region13: #{tpu_custom_call.1} parent=1 // pred_fallthru
      _
    // Predicated region
    $region14: #{tpu_custom_call.1} parent=1 // pred_check
      _
    $region15: #{tpu_custom_call.1} parent=1 // pred_check_branch
      %42 = sbr.rel (0) target = $region17
    $region16: #{tpu_custom_call.1} parent=1 // pred_region
      %43 = dma.done [#allocation4], 128
    $region17: #{tpu_custom_call.1} parent=1 // pred_fallthru
      _
    %44 = vsyncpa [#allocation3], 1
    %45 = vsyncpa [#allocation4], 1

</llo_original>
